<compile_context>
chip_gen: v5e
topology: v5e:2x2
jax: 0.10.0
libtpu: 0.0.40
codegen_flags: <defaults>
</compile_context>

<pallas_src>
import functools
import math

import jax
import jax.numpy as jnp
from jax.experimental import pallas as pl
from jax.experimental.pallas import tpu as pltpu


def _round_up(n: int, m: int) -> int:
    return ((n + m - 1) // m) * m


# ---------------------------------------------------------------------------
# Buffer setup (init-time, plain JAX) — equivalent of PositionalEncoding.__init__
# ---------------------------------------------------------------------------
def make_positional_encoding(d_model: int, max_len: int = 5000,
                             dtype=jnp.float32) -> jnp.ndarray:
    """Returns pe with shape (max_len, 1, d_model), already in `dtype`.

    Build it in the activation dtype (e.g. bf16 for bf16 activations) so the
    forward wrapper never has to cast the whole buffer per call.
    """
    assert d_model % 2 == 0, "d_model must be even (same constraint as the torch code)"
    position = jnp.arange(max_len, dtype=jnp.float32)[:, None]               # (max_len, 1)
    div_term = jnp.exp(
        jnp.arange(0, d_model, 2, dtype=jnp.float32) * (-math.log(10000.0) / d_model)
    )                                                                         # (d_model/2,)
    pe = jnp.zeros((max_len, d_model), dtype=jnp.float32)
    pe = pe.at[:, 0::2].set(jnp.sin(position * div_term))
    pe = pe.at[:, 1::2].set(jnp.cos(position * div_term))
    return pe[:, None, :].astype(dtype)                                       # (max_len, 1, d_model)


# ---------------------------------------------------------------------------
# Kernels (VPU elementwise add, broadcast over batch)
# ---------------------------------------------------------------------------
def _pe_add_kernel_folded(x_ref, pe_ref, o_ref, *, batch: int, d_model: int):
    # x_ref/o_ref: (ts, B*D); pe_ref: (ts, D) with D % 128 == 0.
    # Static per-batch-chunk adds: every slice is lane-aligned (multiple of 128),
    # so loads/stores are unmasked lane-dense vld/vst and no (ts, B*D) VMEM
    # temporary is materialized (the old concatenate path did).
    pe = pe_ref[...]
    for b in range(batch):
        sl = slice(b * d_model, (b + 1) * d_model)
        o_ref[:, sl] = x_ref[:, sl] + pe


def _pe_add_kernel_bcast(x_ref, pe_ref, o_ref):
    # Fallback (d_model not a multiple of 128, e.g. tiny self-test shapes):
    # x_ref/o_ref: (ts, B, D); pe_ref: (ts, 1, D) — broadcast over the batch axis.
    o_ref[...] = x_ref[...] + pe_ref[...]


# ---------------------------------------------------------------------------
# Block-row selection (VMEM-capacity aware)
# ---------------------------------------------------------------------------
_MIN_GRID_STEPS = 4            # keep >=4 S-blocks at large S so both v7x TCs get work
_MAX_BLOCK_BYTES = 8 << 20     # upper bound on one x-block (amortizes ~0.35us/step)
_MIN_BLOCK_BYTES = 2 << 20


def _vmem_budget_bytes() -> int:
    """Scoped-VMEM budget we ask the compiler for, derived from real capacity."""
    try:
        cap = int(pltpu.get_tpu_info().vmem_capacity_bytes)
    except Exception:
        cap = 64 << 20         # v7x per-TC VMEM; safe lower bound for v5e/v6e too
    # Leave headroom for compiler scratch; never request more than 64 MiB.
    return min(cap * 3 // 4, 64 << 20)


def _pick_block_rows(seq_len: int, row_bytes: int, target_block_bytes: int) -> int:
    rows = max(8, (target_block_bytes // max(row_bytes, 1)) // 8 * 8)
    # Clamp so the grid has at least _MIN_GRID_STEPS steps when S is large:
    # a 1-2 step grid leaves one v7x TensorCore idle and defeats pipelining.
    rows_for_steps = max(8, _round_up(-(-seq_len // _MIN_GRID_STEPS), 8))
    rows = min(rows, rows_for_steps)
    return min(rows, _round_up(seq_len, 8))


# ---------------------------------------------------------------------------
# Forward
# ---------------------------------------------------------------------------
def positional_encoding_forward(x: jnp.ndarray, pe: jnp.ndarray, *,
                                block_rows: int | None = None,
                                donate_x: bool = False) -> jnp.ndarray:
    """x: (S, B, D); pe: (max_len, 1, D). Returns x + pe[:S] (in x.dtype).

    donate_x=True aliases x to the output (folded path only); use only when the
    caller does not reuse x afterwards.
    """
    S, B, D = x.shape
    max_len = pe.shape[0]
    assert max_len >= S, "sequence longer than positional-encoding buffer"

    # Pass the FULL pe buffer — the index_map only touches the first ceil(S/ts)
    # row-blocks, so no host-side pe[:S] slice/copy is needed.
    pe2d = jnp.reshape(pe, (max_len, D))
    if pe2d.dtype != x.dtype:
        # Fallback only: this is a full read+write of the (max_len, D) buffer per
        # call. Prefer make_positional_encoding(..., dtype=x.dtype) so it never runs.
        pe2d = pe2d.astype(x.dtype)

    itemsize = jnp.dtype(x.dtype).itemsize
    use_folded = (D % 128 == 0)   # lane-dense path for production d_model

    if use_folded:
        row_bytes = B * D * itemsize
    else:
        # VMEM footprint of each (B, D) slab is padded to (8, 128) tiles.
        row_bytes = _round_up(B, 8) * _round_up(D, 128) * itemsize

    vmem_budget = _vmem_budget_bytes()
    # Live VMEM per step ~= double-buffered x + out + pe blocks ~= (4 + 2/B) * block;
    # budget // 8 keeps headroom even at B == 1.
    target_block = max(_MIN_BLOCK_BYTES, min(_MAX_BLOCK_BYTES, vmem_budget // 8))

    ts = block_rows if block_rows is not None else _pick_block_rows(S, row_bytes, target_block)
    assert ts % 8 == 0, "block_rows must be a multiple of 8"
    grid = (pl.cdiv(S, ts),)      # partial last block is masked by Pallas

    cparams = pltpu.CompilerParams(
        # Blocks along S are independent → megacore-shardable (v7x: 2 TCs).
        dimension_semantics=("parallel",),
        vmem_limit_bytes=vmem_budget,
    )

    if use_folded:
        # Fold (B, D) -> B*D: output last dim is a large multiple of 128
        # (unmasked stores) and the sublane axis is the long S axis.
        x2 = jnp.reshape(x, (S, B * D))
        out2 = pl.pallas_call(
            functools.partial(_pe_add_kernel_folded, batch=B, d_model=D),
            out_shape=jax.ShapeDtypeStruct((S, B * D), x.dtype),
            grid=grid,
            in_specs=[
                pl.BlockSpec((ts, B * D), lambda i: (i, 0)),
                pl.BlockSpec((ts, D), lambda i: (i, 0)),
            ],
            out_specs=pl.BlockSpec((ts, B * D), lambda i: (i, 0)),
            compiler_params=cparams,
            input_output_aliases=({0: 0} if donate_x else {}),
        )(x2, pe2d)
        return jnp.reshape(out2, (S, B, D))

    # Fallback for d_model not a multiple of 128: keep the (S, B, D) layout and
    # broadcast pe over batch in-kernel.
    # TODO(synk): if non-128-multiple d_model matters in production, fold to
    # (S, B*D) here too for lane-dense stores (currently only the D%128==0 path).
    pe3d = jnp.reshape(pe2d, (max_len, 1, D))
    return pl.pallas_call(
        _pe_add_kernel_bcast,
        out_shape=jax.ShapeDtypeStruct((S, B, D), x.dtype),
        grid=grid,
        in_specs=[
            pl.BlockSpec((ts, B, D), lambda i: (i, 0, 0)),
            pl.BlockSpec((ts, 1, D), lambda i: (i, 0, 0)),
        ],
        out_specs=pl.BlockSpec((ts, B, D), lambda i: (i, 0, 0)),
        compiler_params=cparams,
    )(x, pe3d)


# ---------------------------------------------------------------------------
# Example / self-test
# ---------------------------------------------------------------------------
if __name__ == "__main__":
    key = jax.random.PRNGKey(0)
    k1, k2, k3 = jax.random.split(key, 3)

    # Case 1: module-faithful tiny shape (D=32 not 128-aligned → broadcast path).
    S, B, D = 8, 2, 32
    pe = make_positional_encoding(D, max_len=5000, dtype=jnp.float32)
    x = jax.random.normal(k1, (S, B, D), dtype=jnp.float32)
    out = jax.block_until_ready(positional_encoding_forward(x, pe))
    ref = x + pe[:S]
    assert out.shape == (S, B, D)
    assert jnp.allclose(out, ref, atol=1e-6, rtol=1e-6)

    # Case 2: lane-dense folded path, multi-step grid with a masked tail block.
    S2, B2, D2 = 40, 2, 128
    pe2 = make_positional_encoding(D2, max_len=5000, dtype=jnp.float32)
    x2 = jax.random.normal(k2, (S2, B2, D2), dtype=jnp.float32)
    out2 = jax.block_until_ready(
        positional_encoding_forward(x2, pe2, block_rows=16))   # grid=(3,), tail=8 rows
    ref2 = x2 + pe2[:S2]
    assert out2.shape == (S2, B2, D2)
    assert jnp.allclose(out2, ref2, atol=1e-6, rtol=1e-6)

    # Case 3: folded path with automatic block sizing (exercises the >=4-step clamp).
    S3, B3, D3 = 64, 2, 128
    x3 = jax.random.normal(k3, (S3, B3, D3), dtype=jnp.float32)
    out3 = jax.block_until_ready(positional_encoding_forward(x3, pe2))
    ref3 = x3 + pe2[:S3]
    assert out3.shape == (S3, B3, D3)
    assert jnp.allclose(out3, ref3, atol=1e-6, rtol=1e-6)

    print("KERNEL_OK")
</pallas_src>

<mosaic_0001>
module attributes {stable_mosaic.version = 11 : i64} {
  func.func @_pe_add_kernel_bcast(%arg0: i32, %arg1: memref<8x2x32xf32, #tpu.memory_space<vmem>>, %arg2: memref<8x1x32xf32, #tpu.memory_space<vmem>>, %arg3: memref<8x2x32xf32, #tpu.memory_space<vmem>>) attributes {dimension_semantics = [#tpu.dimension_semantics<parallel>], iteration_bounds = array<i64: 1>, scalar_prefetch = 0 : i64, scratch_operands = 0 : i64, tpu.core_type = #tpu.core_type<tc>, window_params = [{transform_indices = @transform_0, window_bounds = array<i64: 8, 2, 32>}, {transform_indices = @transform_1, window_bounds = array<i64: 8, 1, 32>}, {transform_indices = @transform_2, window_bounds = array<i64: 8, 2, 32>}]} {
    %c0 = arith.constant 0 : index
    %c0_0 = arith.constant 0 : index
    %c0_1 = arith.constant 0 : index
    %0 = vector.load %arg1[%c0, %c0_0, %c0_1] : memref<8x2x32xf32, #tpu.memory_space<vmem>>, vector<8x2x32xf32>
    %c0_2 = arith.constant 0 : index
    %c0_3 = arith.constant 0 : index
    %c0_4 = arith.constant 0 : index
    %1 = vector.load %arg2[%c0_2, %c0_3, %c0_4] : memref<8x1x32xf32, #tpu.memory_space<vmem>>, vector<8x1x32xf32>
    %2 = vector.broadcast %1 : vector<8x1x32xf32> to vector<8x2x32xf32>
    %3 = arith.addf %0, %2 : vector<8x2x32xf32>
    %c0_5 = arith.constant 0 : index
    %c0_6 = arith.constant 0 : index
    %c0_7 = arith.constant 0 : index
    %4 = vector.load %arg3[%c0_5, %c0_6, %c0_7] : memref<8x2x32xf32, #tpu.memory_space<vmem>>, vector<8x2x32xf32>
    tpu.vector_store %arg3[%c0_5, %c0_6, %c0_7], %3 {strides = array<i32>} : memref<8x2x32xf32, #tpu.memory_space<vmem>>, vector<8x2x32xf32>,
    return
  }
  func.func @transform_0(%arg0: i32) -> (i32, i32, i32) {
    %c0_i32 = arith.constant 0 : i32
    %c0_i32_0 = arith.constant 0 : i32
    %c0_i32_1 = arith.constant 0 : i32
    return %arg0, %c0_i32, %c0_i32_0 : i32, i32, i32
  }
  func.func @transform_1(%arg0: i32) -> (i32, i32, i32) {
    %c0_i32 = arith.constant 0 : i32
    %c0_i32_0 = arith.constant 0 : i32
    %c0_i32_1 = arith.constant 0 : i32
    return %arg0, %c0_i32, %c0_i32_0 : i32, i32, i32
  }
  func.func @transform_2(%arg0: i32) -> (i32, i32, i32) {
    %c0_i32 = arith.constant 0 : i32
    %c0_i32_0 = arith.constant 0 : i32
    %c0_i32_1 = arith.constant 0 : i32
    return %arg0, %c0_i32, %c0_i32_0 : i32, i32, i32
  }
}

</mosaic_0001>

<llo_original>
// kernel: tpu_custom_call.1
$region0: #{tpu_custom_call.1}
  #allocation0 [shape = 'u32[]', space=smem, size = 0x4, offset = 0x4, fixed_abs, tag = 'smem constant byte address 0x4 - core index']
  #allocation1 [shape = 'u32[72,128]{1,0:T(1,128)}', space=vmem, size = 0x9000, scoped, tag = 'internal scratch']
  %s0 = inlined_call_operand.vmem [shape: f32[8,2,32], index: 0, kind: input, shape index: {}]
  %s1 = inlined_call_operand.vmem [shape: f32[5000,1,32], index: 1, kind: input, shape index: {}]
  %s2 = inlined_call_operand.hbm [shape: f32[8,2,32], index: 2, kind: output, shape index: {}]
  %s3 = sld [smem:[#allocation0]]
  $region18: #{tpu_custom_call.1} parent=0
    _
  %s5 = ssub.s32 1, %s3
  %s6 = scalar_select 0, %s5, %s3
  $region1: #{tpu_custom_call.1} parent=0
    #allocation2 [shape = 'u8[8192]{0}', space=vmem, size = 0x2000, scoped, tag = 'output window, operand 0, single buffered']
    #allocation3 [shape = 's32[1]{0}', space=sflag, size = 0x4, scoped, tag = 'scoped memory for tpu_custom_call.1']
    %7 = vsyncpa [#allocation3], 0
    // Predicated region
    $region2: #{tpu_custom_call.1} parent=1 // pred_check
      _
    $region3: #{tpu_custom_call.1} parent=1 // pred_check_branch
      %9 = sbr.rel (0) target = $region5
    $region4: #{tpu_custom_call.1} parent=1 // pred_region
      _
    $region5: #{tpu_custom_call.1} parent=1 // pred_fallthru
      _
    // Predicated region
    $region6: #{tpu_custom_call.1} parent=1 // pred_check
      _
    $region7: #{tpu_custom_call.1} parent=1 // pred_check_branch
      %11 = sbr.rel (0) target = $region9
    $region8: #{tpu_custom_call.1} parent=1 // pred_region
      _
    $region9: #{tpu_custom_call.1} parent=1 // pred_fallthru
      _
    %v12 = vld [vmem:[%s0] sm:$0x3]
    %v13 = vld [vmem:[%s0 + $0x2] sm:$0x3]
    %v14 = vld [vmem:[%s0 + $0x4] sm:$0x3]
    %v15 = vld [vmem:[%s0 + $0x6] sm:$0x3]
    %v16 = vld [vmem:[%s0 + $0x8] sm:$0x3]
    %v17 = vld [vmem:[%s0 + $0xa] sm:$0x3]
    %v18 = vld [vmem:[%s0 + $0xc] sm:$0x3]
    %v19 = vld [vmem:[%s0 + $0xe] sm:$0x3]
    %v20 = vld [vmem:[%s1] sm:$0x1]
    %v21 = vld [vmem:[%s1 + $0x1] sm:$0x1]
    %v22 = vld [vmem:[%s1 + $0x2] sm:$0x1]
    %v23 = vld [vmem:[%s1 + $0x3] sm:$0x1]
    %v24 = vld [vmem:[%s1 + $0x4] sm:$0x1]
    %v25 = vld [vmem:[%s1 + $0x5] sm:$0x1]
    %v26 = vld [vmem:[%s1 + $0x6] sm:$0x1]
    %v27 = vld [vmem:[%s1 + $0x7] sm:$0x1]
    %v36 = vperm.slane %v20, 0
    %v37 = vperm.slane %v21, 0
    %v38 = vperm.slane %v22, 0
    %v39 = vperm.slane %v23, 0
    %v40 = vperm.slane %v24, 0
    %v41 = vperm.slane %v25, 0
    %v42 = vperm.slane %v26, 0
    %v43 = vperm.slane %v27, 0
    %v52 = vadd.f32 %v12, %v36
    %v53 = vadd.f32 %v13, %v37
    %v54 = vadd.f32 %v14, %v38
    %v55 = vadd.f32 %v15, %v39
    %v56 = vadd.f32 %v16, %v40
    %v57 = vadd.f32 %v17, %v41
    %v58 = vadd.f32 %v18, %v42
    %v59 = vadd.f32 %v19, %v43
    %vm60 = vcmask 254976
    %61 = vst.msk [vmem:[#allocation2] sm:$0x3] %vm60, %v52
    %62 = vst.msk [vmem:[#allocation2 + $0x2] sm:$0x3] %vm60, %v53
    %63 = vst.msk [vmem:[#allocation2 + $0x4] sm:$0x3] %vm60, %v54
    %64 = vst.msk [vmem:[#allocation2 + $0x6] sm:$0x3] %vm60, %v55
    %65 = vst.msk [vmem:[#allocation2 + $0x8] sm:$0x3] %vm60, %v56
    %66 = vst.msk [vmem:[#allocation2 + $0xa] sm:$0x3] %vm60, %v57
    %67 = vst.msk [vmem:[#allocation2 + $0xc] sm:$0x3] %vm60, %v58
    %68 = vst.msk [vmem:[#allocation2 + $0xe] sm:$0x3] %vm60, %v59
    // Predicated region
    $region10: #{tpu_custom_call.1} parent=1 // pred_check
      _
    $region11: #{tpu_custom_call.1} parent=1 // pred_check_branch
      %70 = sbr.rel (0) target = $region13
    $region12: #{tpu_custom_call.1} parent=1 // pred_region
      %72 = vsyncadd [#allocation3], 0
      %s73 = sshll.u32 [#allocation2], 4
      %s74 = int_to_ptr.vmem [resolvable:$true] %s73
      %s75 = sshll.u32 %s2, 4
      %s76 = int_to_ptr.hbm [resolvable:$true] %s75
      %81 = dma.vmem_to_hbm [thread:$0]  %s74, 256, %s76, [#allocation3], 32, 32, 2
    $region13: #{tpu_custom_call.1} parent=1 // pred_fallthru
      _
    // Predicated region
    $region14: #{tpu_custom_call.1} parent=1 // pred_check
      _
    $region15: #{tpu_custom_call.1} parent=1 // pred_check_branch
      %83 = sbr.rel (0) target = $region17
    $region16: #{tpu_custom_call.1} parent=1 // pred_region
      %85 = dma.done [#allocation3], 256
    $region17: #{tpu_custom_call.1} parent=1 // pred_fallthru
      _
    %86 = vsyncpa [#allocation3], 1

</llo_original>
